<compile_context>
chip_gen: v5e
topology: v5e:2x2
jax: 0.10.0
libtpu: 0.0.40
codegen_flags: <defaults>
</compile_context>

<pallas_src>
import functools

import jax
import jax.numpy as jnp
from jax import lax
from jax.experimental import pallas as pl
from jax.experimental.pallas import tpu as pltpu


def _instance_norm_kernel(x_ref, o_ref, *, eps, inv_hw):
    # x_ref / o_ref: (TR, HWp) block; each row is one (b, c) instance,
    # zero-padded on the lane axis past the true HW elements.
    x = x_ref[...].astype(jnp.float32)
    # Single pass: sum and sum-of-squares (cross-lane reductions on the XLU).
    # Padded lanes are zero, so dividing by the true HW gives exact statistics.
    s1 = jnp.sum(x, axis=-1, keepdims=True) * inv_hw        # E[x]   (mean)
    s2 = jnp.sum(x * x, axis=-1, keepdims=True) * inv_hw    # E[x^2]
    var = jnp.maximum(s2 - s1 * s1, 0.0)                    # == E[(x-mean)^2]
    inv = lax.rsqrt(var + eps)                               # EUP slot
    o_ref[...] = ((x - s1) * inv).astype(o_ref.dtype)


def _vmem_limit_bytes():
    """Generation-aware scoped-VMEM request with headroom for Mosaic scratch."""
    try:
        cap = int(pltpu.get_tpu_info().vmem_capacity_bytes)
    except Exception:
        cap = 64 << 20  # assume the smallest (v7x per-TC) if the query fails
    # v7x (64 MiB physical) -> 48 MiB; v5e/v6e (128 MiB physical) -> 64 MiB.
    return min(max(cap - (16 << 20), 16 << 20), 64 << 20)


def _choose_row_tile(R, HWp, itemsize, budget_bytes):
    """Rows per block: a multiple of 8 (or the full extent when R < 8), as
    large as the VMEM budget allows, but small enough that the 1-D grid has
    >= 2 steps when there is enough work (keeps both v7x TensorCores busy)."""
    if R < 8:
        return R  # full extent is always a legal block dim
    # Per row of a block: double-buffered in+out DMA buffers (4 * itemsize per
    # element, in the *input* dtype) plus ~2 f32 in-kernel temporaries.
    per_row = HWp * (4 * itemsize + 8)
    tr = max(8, min(budget_bytes // per_row, R) // 8 * 8)
    if R >= 16:  # ensure at least 2 grid steps for megacore sharding
        tr = min(tr, max(8, (R // 2) // 8 * 8))
    return tr


def instance_norm(x, eps=1e-8):
    """Pallas InstanceNorm. x: (B, C, H, W) -> (B, C, H, W), same dtype."""
    if x.ndim != 4:
        raise ValueError(
            f"The input tensor should be with shape [batch_size, num_channels, "
            f"height, width], but {x.shape} received!")
    B, C, H, W = x.shape
    HW = H * W
    R = B * C

    # Lane-dense layout: pad the spatial axis up to a multiple of 128 lanes.
    HWp = max(128, ((HW + 127) // 128) * 128)
    x2 = x.reshape(R, HW)
    if HWp != HW:
        x2 = jnp.pad(x2, ((0, 0), (0, HWp - HW)))

    itemsize = jnp.dtype(x.dtype).itemsize
    vmem_limit = _vmem_limit_bytes()
    TR = _choose_row_tile(R, HWp, itemsize, budget_bytes=int(0.7 * vmem_limit))
    grid = (pl.cdiv(R, TR),)

    cost = pl.CostEstimate(
        flops=6 * R * HW,
        transcendentals=R,
        bytes_accessed=2 * R * HW * itemsize,
    )

    out = pl.pallas_call(
        functools.partial(_instance_norm_kernel,
                          eps=float(eps), inv_hw=1.0 / float(HW)),
        out_shape=jax.ShapeDtypeStruct((R, HWp), x.dtype),
        grid=grid,
        in_specs=[pl.BlockSpec((TR, HWp), lambda i: (i, 0))],
        out_specs=pl.BlockSpec((TR, HWp), lambda i: (i, 0)),
        compiler_params=pltpu.CompilerParams(
            dimension_semantics=("parallel",),
            vmem_limit_bytes=int(vmem_limit)),
        cost_estimate=cost,
    )(x2)

    if HWp != HW:
        out = out[:, :HW]
    return out.reshape(B, C, H, W)


def reference(x, eps=1e-8):
    """Pure-JAX reference mirroring the PyTorch forward exactly."""
    x = x - jnp.mean(x, axis=(2, 3), keepdims=True)
    return x / jnp.sqrt(jnp.mean(x * x, axis=(2, 3), keepdims=True) + eps)


def _check(name, x, atol):
    out = jax.block_until_ready(instance_norm(x))
    ref = reference(x.astype(jnp.float32))
    assert out.shape == x.shape, (name, out.shape)
    err = jnp.max(jnp.abs(out.astype(jnp.float32) - ref))
    assert err <= atol, f"{name}: max abs err {err}"


if __name__ == "__main__":
    key = jax.random.PRNGKey(0)
    k1, k2, k3, k4, k5 = jax.random.split(key, 5)

    # Primary small test: batch=2, channels=4, spatial 16x16 (HW=256 lanes).
    _check("base", jax.random.normal(k1, (2, 4, 16, 16), jnp.float32), 1e-5)

    # Larger: exercises the multi-step row grid (R=16 -> 2 grid steps).
    _check("multi_step",
           3.0 * jax.random.normal(k2, (2, 8, 32, 32), jnp.float32) + 1.5, 1e-5)

    # Small spatial (StyleGAN 4x4 layer): HW=16 -> padded to 128 lanes.
    _check("pad_hw", jax.random.normal(k3, (2, 4, 4, 4), jnp.float32), 1e-5)

    # Ragged row count (R=15, not a multiple of 8) + padded HW=64.
    _check("ragged_rows", jax.random.normal(k4, (3, 5, 8, 8), jnp.float32), 1e-5)

    # bf16 input: dtype-aware tiling, f32 accumulation inside the kernel.
    _check("bf16", jax.random.normal(k5, (2, 4, 16, 16), jnp.bfloat16), 5e-2)

    print("KERNEL_OK")
</pallas_src>

<mosaic_0001>
module attributes {stable_mosaic.version = 11 : i64} {
  func.func @_instance_norm_kernel(%arg0: i32, %arg1: memref<8x256xf32, #tpu.memory_space<vmem>>, %arg2: memref<8x256xf32, #tpu.memory_space<vmem>>) attributes {dimension_semantics = [#tpu.dimension_semantics<parallel>], iteration_bounds = array<i64: 1>, scalar_prefetch = 0 : i64, scratch_operands = 0 : i64, tpu.core_type = #tpu.core_type<tc>, window_params = [{transform_indices = @transform_0, window_bounds = array<i64: 8, 256>}, {transform_indices = @transform_1, window_bounds = array<i64: 8, 256>}]} {
    %c0 = arith.constant 0 : index
    %c0_0 = arith.constant 0 : index
    %0 = vector.load %arg1[%c0, %c0_0] : memref<8x256xf32, #tpu.memory_space<vmem>>, vector<8x256xf32>
    %cst = arith.constant dense<0.000000e+00> : vector<8xf32>
    %1 = vector.multi_reduction <add>, %0, %cst [1] : vector<8x256xf32> to vector<8xf32>
    %2 = vector.shape_cast %1 : vector<8xf32> to vector<8x1xf32>
    %cst_1 = arith.constant 3.906250e-03 : f32
    %3 = vector.broadcast %cst_1 : f32 to vector<8x1xf32>
    %4 = arith.mulf %2, %3 : vector<8x1xf32>
    %5 = arith.mulf %0, %0 : vector<8x256xf32>
    %cst_2 = arith.constant dense<0.000000e+00> : vector<8xf32>
    %6 = vector.multi_reduction <add>, %5, %cst_2 [1] : vector<8x256xf32> to vector<8xf32>
    %7 = vector.shape_cast %6 : vector<8xf32> to vector<8x1xf32>
    %cst_3 = arith.constant 3.906250e-03 : f32
    %8 = vector.broadcast %cst_3 : f32 to vector<8x1xf32>
    %9 = arith.mulf %7, %8 : vector<8x1xf32>
    %10 = arith.mulf %4, %4 : vector<8x1xf32>
    %11 = arith.subf %9, %10 : vector<8x1xf32>
    %cst_4 = arith.constant 0.000000e+00 : f32
    %12 = vector.broadcast %cst_4 : f32 to vector<8x1xf32>
    %13 = arith.maximumf %11, %12 : vector<8x1xf32>
    %cst_5 = arith.constant 9.99999993E-9 : f32
    %14 = vector.broadcast %cst_5 : f32 to vector<8x1xf32>
    %15 = arith.addf %13, %14 : vector<8x1xf32>
    %16 = math.rsqrt %15 : vector<8x1xf32>
    %17 = vector.broadcast %4 : vector<8x1xf32> to vector<8x256xf32>
    %18 = arith.subf %0, %17 : vector<8x256xf32>
    %19 = vector.broadcast %16 : vector<8x1xf32> to vector<8x256xf32>
    %20 = arith.mulf %18, %19 : vector<8x256xf32>
    %c0_6 = arith.constant 0 : index
    %c0_7 = arith.constant 0 : index
    %21 = vector.load %arg2[%c0_6, %c0_7] : memref<8x256xf32, #tpu.memory_space<vmem>>, vector<8x256xf32>
    tpu.vector_store %arg2[%c0_6, %c0_7], %20 {strides = array<i32>} : memref<8x256xf32, #tpu.memory_space<vmem>>, vector<8x256xf32>,
    return
  }
  func.func @transform_0(%arg0: i32) -> (i32, i32) {
    %c0_i32 = arith.constant 0 : i32
    %c0_i32_0 = arith.constant 0 : i32
    return %arg0, %c0_i32 : i32, i32
  }
  func.func @transform_1(%arg0: i32) -> (i32, i32) {
    %c0_i32 = arith.constant 0 : i32
    %c0_i32_0 = arith.constant 0 : i32
    return %arg0, %c0_i32 : i32, i32
  }
}

</mosaic_0001>

<llo_original>
// kernel: tpu_custom_call.1
$region0: #{tpu_custom_call.1}
  #allocation0 [shape = 'u32[]', space=smem, size = 0x4, offset = 0x4, fixed_abs, tag = 'smem constant byte address 0x4 - core index']
  #allocation1 [shape = 'u32[72,128]{1,0:T(1,128)}', space=vmem, size = 0x9000, scoped, tag = 'internal scratch']
  %s0 = inlined_call_operand.hbm [shape: f32[8,256], index: 0, kind: input, shape index: {}]
  %s1 = inlined_call_operand.hbm [shape: f32[8,256], index: 1, kind: output, shape index: {}]
  %s2 = sld [smem:[#allocation0]]
  $region18: #{tpu_custom_call.1} parent=0
    _
  %s4 = ssub.s32 1, %s2
  %s5 = scalar_select 0, %s4, %s2
  $region1: #{tpu_custom_call.1} parent=0
    #allocation2 [shape = 'u8[8192]{0}', space=vmem, size = 0x2000, scoped, tag = 'input window, operand 0, single buffered']
    #allocation3 [shape = 's32[1]{0}', space=sflag, size = 0x4, scoped, tag = 'scoped memory for tpu_custom_call.1']
    #allocation4 [shape = 's32[1]{0}', space=sflag, size = 0x4, scoped, tag = 'scoped memory for tpu_custom_call.1']
    #allocation5 [shape = 'u8[8192]{0}', space=vmem, size = 0x2000, scoped, tag = 'output window, operand 0, single buffered']
    %6 = vsyncpa [#allocation3], 0
    %7 = vsyncpa [#allocation4], 0
    // Predicated region
    $region2: #{tpu_custom_call.1} parent=1 // pred_check
      _
    $region3: #{tpu_custom_call.1} parent=1 // pred_check_branch
      %9 = sbr.rel (0) target = $region5
    $region4: #{tpu_custom_call.1} parent=1 // pred_region
      %11 = vsyncadd [#allocation3], 0
      %s13 = sshll.u32 %s0, 4
      %s14 = int_to_ptr.hbm [resolvable:$true] %s13
      %s15 = sshll.u32 [#allocation2], 4
      %s16 = int_to_ptr.vmem [resolvable:$true] %s15
      %18 = dma.hbm_to_vmem [thread:$0]  %s14, 256, %s16, [#allocation3]
    $region5: #{tpu_custom_call.1} parent=1 // pred_fallthru
      _
    // Predicated region
    $region6: #{tpu_custom_call.1} parent=1 // pred_check
      _
    $region7: #{tpu_custom_call.1} parent=1 // pred_check_branch
      %20 = sbr.rel (0) target = $region9
    $region8: #{tpu_custom_call.1} parent=1 // pred_region
      %22 = dma.done [#allocation3], 256
    $region9: #{tpu_custom_call.1} parent=1 // pred_fallthru
      _
    %v23 = vld [vmem:[#allocation2] sm:$0xff]
    %v24 = vld [vmem:[#allocation2 + $0x8] sm:$0xff]
    %v25 = vadd.f32 %v23, %v24
    %26 = vadd.xlane.f32.xlu0 %v25
    %v27 = vpop.xlane.xlu0 %26
    %v28 = vmul.f32 %v27, 0.00390625
    %v29 = vmul.f32 %v23, %v23
    %v30 = vmul.f32 %v24, %v24
    %v31 = vadd.f32 %v29, %v30
    %32 = vadd.xlane.f32.xlu0 %v31
    %v33 = vpop.xlane.xlu0 %32
    %v34 = vmul.f32 %v33, 0.00390625
    %v35 = vmul.f32 %v28, %v28
    %v36 = vsub.f32 %v34, %v35
    %v37 = vmax.f32 %v36, 0.0
    %v38 = vadd.f32 %v37, 1e-08
    %v39 = vrsqrt.pop %v38
    %v40 = vmul.f32 %v39, %v38
    %v41 = vmul.f32 %v40, %v39
    %v42 = vmul.f32 0.5, %v41
    %v43 = vsub.f32 1.5, %v42
    %v44 = vmul.f32 %v39, %v43
    %vm45 = vweird.f32 %v38
    %vm46 = vweird.f32 %v39
    %vm47 = vmor %vm45, %vm46
    %v48 = vsel %vm47, %v39, %v44
    %v49 = vsub.f32 %v23, %v28
    %v50 = vsub.f32 %v24, %v28
    %v51 = vmul.f32 %v49, %v48
    %v52 = vmul.f32 %v50, %v48
    %53 = vst [vmem:[#allocation5] sm:$0xff] %v51
    %54 = vst [vmem:[#allocation5 + $0x8] sm:$0xff] %v52
    // Predicated region
    $region10: #{tpu_custom_call.1} parent=1 // pred_check
      _
    $region11: #{tpu_custom_call.1} parent=1 // pred_check_branch
      %56 = sbr.rel (0) target = $region13
    $region12: #{tpu_custom_call.1} parent=1 // pred_region
      %58 = vsyncadd [#allocation4], 0
      %s60 = sshll.u32 [#allocation5], 4
      %s61 = int_to_ptr.vmem [resolvable:$true] %s60
      %s62 = sshll.u32 %s1, 4
      %s63 = int_to_ptr.hbm [resolvable:$true] %s62
      %65 = dma.vmem_to_hbm [thread:$0]  %s61, 256, %s63, [#allocation4]
    $region13: #{tpu_custom_call.1} parent=1 // pred_fallthru
      _
    // Predicated region
    $region14: #{tpu_custom_call.1} parent=1 // pred_check
      _
    $region15: #{tpu_custom_call.1} parent=1 // pred_check_branch
      %67 = sbr.rel (0) target = $region17
    $region16: #{tpu_custom_call.1} parent=1 // pred_region
      %69 = dma.done [#allocation4], 256
    $region17: #{tpu_custom_call.1} parent=1 // pred_fallthru
      _
    %70 = vsyncpa [#allocation3], 1
    %71 = vsyncpa [#allocation4], 1

</llo_original>
